<compile_context>
chip_gen: v5e
topology: v5e:2x2
jax: 0.10.0
libtpu: 0.0.40
codegen_flags: <defaults>
</compile_context>

<pallas_src>
import jax
import jax.numpy as jnp
from jax import lax
from jax.experimental import pallas as pl
from jax.experimental.pallas import tpu as pltpu


def _round_up(x, m):
    return ((x + m - 1) // m) * m


def _vmem_limit_bytes():
    """Scoped-VMEM limit derived from the actual chip, with safe fallback."""
    cap = None
    try:
        info = pltpu.get_tpu_info()
        cap = getattr(info, "vmem_capacity_bytes", None)
    except Exception:
        cap = None
    if not cap or cap <= 0:
        cap = 64 * 1024 * 1024            # conservative (v7x per-TC VMEM)
    # Leave headroom: ~5/8 of physical, never above 96 MiB.
    #   v7x  (64 MiB)  -> 40 MiB limit
    #   v5e/v6e (128 MiB) -> 80 MiB limit
    return min(int(cap * 5 // 8), 96 * 1024 * 1024)


def _choose_block_n(n, c, itemsize, sublane, vmem_limit):
    """Row tile sized by bytes: double-buffered input + live f32 intermediates."""
    # Per-row VMEM footprint:
    #   2 x (block_n, C) input tiles (double-buffer)      -> 2 * C * itemsize
    #   ~3 x (block_n, C) f32 live intermediates          -> 3 * C * 4
    #   (xm, ex, onehot/select temp; f32 cast of the tile)
    per_row = 2 * c * itemsize + 3 * c * 4
    budget = int(vmem_limit * 0.7)
    rows = max(sublane, budget // max(per_row, 1))
    # Keep >= ~4 grid steps (where N allows) so the "parallel" axis can shard
    # across TensorCores and the DMA/compute pipeline has work in flight.
    grid_cap = _round_up(pl.cdiv(n, 4), sublane)
    rows = min(rows, max(sublane, grid_cap))
    rows = max(sublane, (rows // sublane) * sublane)
    return min(rows, _round_up(n, sublane))


def _make_focal_kernel(gamma):
    gamma = float(gamma)

    def _focal_from_base(base):
        # base = 1 - p_t, computed only on the (TN, 1) target column.
        if gamma == 0.0:
            return jnp.ones_like(base)
        if gamma == 1.0:
            return base
        ig = int(gamma)
        if float(ig) == gamma and 2 <= ig <= 8:
            f = base
            for _ in range(ig - 1):
                f = f * base
            return f
        # Non-integer gamma: pow (exp/log) but only over (TN, 1), not (TN, C).
        return base ** gamma

    def kernel(x_ref, t_ref, loss_ref):
        x = x_ref[...].astype(jnp.float32)                   # (TN, C)
        t = t_ref[...]                                       # (TN, 1) int32

        # log-softmax pieces: one full-tile exp + lane reductions.
        m = jnp.max(x, axis=1, keepdims=True)                # (TN, 1)
        xm = x - m                                           # raw x dead here
        ex = jnp.exp(xm)                                     # (TN, C)
        lse = jnp.log(jnp.sum(ex, axis=1, keepdims=True))    # (TN, 1)

        # gather xm[row, target[row]] via one-hot masked lane reduce
        col = lax.broadcasted_iota(jnp.int32, xm.shape, 1)
        onehot = col == t                                    # (TN, C) bool
        xm_t = jnp.sum(jnp.where(onehot, xm, 0.0), axis=1, keepdims=True)

        logp_t = xm_t - lse                                  # (TN, 1)
        p_t = jnp.exp(logp_t)                                # tiny column EUP
        focal_t = _focal_from_base(1.0 - p_t)                # (TN, 1)
        loss_ref[...] = -focal_t * logp_t

    return kernel


def yangao_loss(logits, target, gamma=1.0, weight=None, operation="mean",
                block_n=None):
    """Pallas-TPU equivalent of YangaoLoss.forward(input, target)."""
    N, C = logits.shape
    itemsize = jnp.dtype(logits.dtype).itemsize
    sublane = {4: 8, 2: 16, 1: 32}.get(itemsize, 8)

    vmem_limit = _vmem_limit_bytes()
    if block_n is None:
        block_n = _choose_block_n(N, C, itemsize, sublane, vmem_limit)
    else:
        block_n = max(sublane, (int(block_n) // sublane) * sublane)
        block_n = min(block_n, _round_up(N, sublane))

    grid = pl.cdiv(N, block_n)                 # partial tail block handled by Pallas
    t = target.astype(jnp.int32).reshape(N, 1)

    cost = pl.CostEstimate(
        flops=6 * N * C,
        transcendentals=N * C + 2 * N,
        bytes_accessed=N * C * itemsize + 2 * N * 4,
    )

    per_row = pl.pallas_call(
        _make_focal_kernel(gamma),
        out_shape=jax.ShapeDtypeStruct((N, 1), jnp.float32),
        grid_spec=pltpu.PrefetchScalarGridSpec(
            num_scalar_prefetch=0,
            grid=(grid,),
            in_specs=[
                pl.BlockSpec((block_n, C), lambda i: (i, 0)),
                pl.BlockSpec((block_n, 1), lambda i: (i, 0)),
            ],
            out_specs=pl.BlockSpec((block_n, 1), lambda i: (i, 0)),
        ),
        compiler_params=pltpu.CompilerParams(
            dimension_semantics=("parallel",),     # no cross-step state
            vmem_limit_bytes=vmem_limit),
        cost_estimate=cost,
    )(logits, t)

    if weight is not None:
        # Literal PyTorch semantics: loss (N,1) * weight[target] (N,) broadcasts
        # to an (N, N) outer product before the reduction.
        w_t = jnp.take(jnp.asarray(weight, jnp.float32),
                       target.astype(jnp.int32))             # (N,)
        if operation == "mean":
            return jnp.mean(per_row) * jnp.mean(w_t)
        elif operation == "sum":
            return jnp.sum(per_row) * jnp.sum(w_t)
        else:
            return per_row * w_t[None, :]                    # (N, N) like torch
    if operation == "mean":
        return jnp.mean(per_row)
    elif operation == "sum":
        return jnp.sum(per_row)
    return per_row                                           # (N, 1)


def _reference(logits, target, gamma=1.0, weight=None, operation="mean"):
    # Pure-JAX line-by-line mirror of the PyTorch forward (incl. broadcasting).
    logp = jax.nn.log_softmax(logits.astype(jnp.float32), axis=1)
    probs = jnp.exp(logp)
    focal = (1.0 - probs) ** gamma
    logp_t = jnp.take_along_axis(logp, target[:, None], axis=1)
    focal_t = jnp.take_along_axis(focal, target[:, None], axis=1)
    loss = -focal_t * logp_t                                 # (N, 1)
    if weight is not None:
        # (N,1) * (N,) -> (N,N), same numpy-style broadcast torch performs.
        loss = loss * jnp.asarray(weight, jnp.float32)[target]
    if operation == "mean":
        return loss.mean()
    elif operation == "sum":
        return loss.sum()
    return loss


if __name__ == "__main__":
    key = jax.random.PRNGKey(0)

    def run_case(N, C, cfg, key):
        k1, k2, k3 = jax.random.split(key, 3)
        logits = jax.random.normal(k1, (N, C), dtype=jnp.float32)
        target = jax.random.randint(k2, (N,), 0, C, dtype=jnp.int32)
        if cfg.get("use_weight", False):
            weight = jax.random.uniform(k3, (C,), dtype=jnp.float32) + 0.5
        else:
            weight = None
        out = yangao_loss(logits, target, gamma=cfg["gamma"], weight=weight,
                          operation=cfg["operation"])
        out = jax.block_until_ready(out)
        ref = _reference(logits, target, gamma=cfg["gamma"], weight=weight,
                         operation=cfg["operation"])
        assert out.shape == ref.shape, (cfg, out.shape, ref.shape)
        assert jnp.allclose(out, ref, rtol=1e-5, atol=1e-5), (cfg, out, ref)

    cases_main = [
        dict(gamma=1.0, use_weight=False, operation="mean"),
        dict(gamma=2.0, use_weight=False, operation="sum"),
        dict(gamma=0.5, use_weight=False, operation="mean"),
        dict(gamma=0.0, use_weight=False, operation="sum"),
        dict(gamma=1.0, use_weight=True,  operation="mean"),
        dict(gamma=2.0, use_weight=True,  operation="sum"),
        dict(gamma=1.0, use_weight=False, operation="none"),
        dict(gamma=1.0, use_weight=True,  operation="none"),
    ]
    keys = jax.random.split(key, len(cases_main) + 2)
    for cfg, k in zip(cases_main, keys[:len(cases_main)]):
        run_case(16, 32, cfg, k)

    # Non-divisible N exercises the unpadded partial tail block.
    run_case(20, 48, dict(gamma=1.0, use_weight=False, operation="mean"), keys[-2])
    run_case(20, 48, dict(gamma=2.0, use_weight=True,  operation="sum"),  keys[-1])

    print("KERNEL_OK")
</pallas_src>

<mosaic_0001>
module attributes {stable_mosaic.version = 11 : i64} {
  func.func @kernel(%arg0: i32, %arg1: memref<8x32xf32, #tpu.memory_space<vmem>>, %arg2: memref<8x1xi32, #tpu.memory_space<vmem>>, %arg3: memref<8x1xf32, #tpu.memory_space<vmem>>) attributes {dimension_semantics = [#tpu.dimension_semantics<parallel>], iteration_bounds = array<i64: 2>, scalar_prefetch = 0 : i64, scratch_operands = 0 : i64, tpu.core_type = #tpu.core_type<tc>, window_params = [{transform_indices = @transform_0, window_bounds = array<i64: 8, 32>}, {transform_indices = @transform_1, window_bounds = array<i64: 8, 1>}, {transform_indices = @transform_2, window_bounds = array<i64: 8, 1>}]} {
    %c0 = arith.constant 0 : index
    %c0_0 = arith.constant 0 : index
    %0 = vector.load %arg1[%c0, %c0_0] : memref<8x32xf32, #tpu.memory_space<vmem>>, vector<8x32xf32>
    %c0_1 = arith.constant 0 : index
    %c0_2 = arith.constant 0 : index
    %1 = vector.load %arg2[%c0_1, %c0_2] : memref<8x1xi32, #tpu.memory_space<vmem>>, vector<8x1xi32>
    %cst = arith.constant dense<0xFF800000> : vector<8xf32>
    %2 = vector.multi_reduction <maximumf>, %0, %cst [1] : vector<8x32xf32> to vector<8xf32>
    %3 = vector.shape_cast %2 : vector<8xf32> to vector<8x1xf32>
    %4 = vector.broadcast %3 : vector<8x1xf32> to vector<8x32xf32>
    %5 = arith.subf %0, %4 : vector<8x32xf32>
    %6 = math.exp %5 : vector<8x32xf32>
    %cst_3 = arith.constant dense<0.000000e+00> : vector<8xf32>
    %7 = vector.multi_reduction <add>, %6, %cst_3 [1] : vector<8x32xf32> to vector<8xf32>
    %8 = vector.shape_cast %7 : vector<8xf32> to vector<8x1xf32>
    %9 = math.log %8 : vector<8x1xf32>
    %10 = tpu.iota {dimensions = array<i32: 1>} : vector<8x32xi32>
    %11 = vector.broadcast %1 : vector<8x1xi32> to vector<8x32xi32>
    %12 = arith.cmpi eq, %10, %11 : vector<8x32xi32>
    %cst_4 = arith.constant 0.000000e+00 : f32
    %13 = vector.broadcast %cst_4 : f32 to vector<8x32xf32>
    %14 = arith.select %12, %5, %13 : vector<8x32xi1>, vector<8x32xf32>
    %cst_5 = arith.constant dense<0.000000e+00> : vector<8xf32>
    %15 = vector.multi_reduction <add>, %14, %cst_5 [1] : vector<8x32xf32> to vector<8xf32>
    %16 = vector.shape_cast %15 : vector<8xf32> to vector<8x1xf32>
    %17 = arith.subf %16, %9 : vector<8x1xf32>
    %18 = math.exp %17 : vector<8x1xf32>
    %cst_6 = arith.constant 1.000000e+00 : f32
    %19 = vector.broadcast %cst_6 : f32 to vector<8x1xf32>
    %20 = arith.subf %19, %18 : vector<8x1xf32>
    %cst_7 = arith.constant 0.000000e+00 : f32
    %21 = vector.broadcast %cst_7 : f32 to vector<8x1xf32>
    %22 = arith.subf %21, %20 : vector<8x1xf32>
    %23 = arith.mulf %22, %17 : vector<8x1xf32>
    %c0_8 = arith.constant 0 : index
    %c0_9 = arith.constant 0 : index
    %24 = vector.load %arg3[%c0_8, %c0_9] : memref<8x1xf32, #tpu.memory_space<vmem>>, vector<8x1xf32>
    tpu.vector_store %arg3[%c0_8, %c0_9], %23 {strides = array<i32>} : memref<8x1xf32, #tpu.memory_space<vmem>>, vector<8x1xf32>,
    return
  }
  func.func @transform_0(%arg0: i32) -> (i32, i32) {
    %c0_i32 = arith.constant 0 : i32
    %c0_i32_0 = arith.constant 0 : i32
    return %arg0, %c0_i32 : i32, i32
  }
  func.func @transform_1(%arg0: i32) -> (i32, i32) {
    %c0_i32 = arith.constant 0 : i32
    %c0_i32_0 = arith.constant 0 : i32
    return %arg0, %c0_i32 : i32, i32
  }
  func.func @transform_2(%arg0: i32) -> (i32, i32) {
    %c0_i32 = arith.constant 0 : i32
    %c0_i32_0 = arith.constant 0 : i32
    return %arg0, %c0_i32 : i32, i32
  }
}

</mosaic_0001>

<llo_original>
// kernel: tpu_custom_call.1
$region0: #{tpu_custom_call.1}
  #allocation0 [shape = 'u32[]', space=smem, size = 0x4, offset = 0x4, fixed_abs, tag = 'smem constant byte address 0x4 - core index']
  #allocation1 [shape = 'u32[72,128]{1,0:T(1,128)}', space=vmem, size = 0x9000, scoped, tag = 'internal scratch']
  %s0 = inlined_call_operand.vmem [shape: f32[16,32], index: 0, kind: input, shape index: {}]
  %s1 = inlined_call_operand.vmem [shape: s32[16,1], index: 1, kind: input, shape index: {}]
  %s2 = inlined_call_operand.vmem [shape: f32[16,1], index: 2, kind: output, shape index: {}]
  %s3 = sld [smem:[#allocation0]]
  $region41: #{tpu_custom_call.1} parent=0
    _
  %s5 = ssub.s32 1, %s3
  %s6 = scalar_select 0, %s5, %s3
  loop: start=0, step=1, limit=4
  $region2: #{tpu_custom_call.1} parent=0 // loop_pre_header
    _
  $region3: #{tpu_custom_call.1} parent=0 // loop_header
    %s8 = sphi 0, %s12
    %p9 = scmp.ge.s32.totalorder %s8, 4
    %s18 = sphi 0, %s20
    %s21 = sphi 0, %s18
    %s22 = sphi 0, %s21
    %s38 = sphi 0, %s22
    %s44 = sphi 0, %s46
    %s47 = sphi 0, %s44
    %s48 = sphi 0, %s47
    %s64 = sphi 0, %s48
    %s70 = sphi 0, %s72
    %s73 = sphi 0, %s70
    %s74 = sphi 0, %s73
    %s90 = sphi 0, %s74
  $region4: #{tpu_custom_call.1} parent=0 // loop_header_branch
    %11 = sbr.rel (%p9) target = $region8
  $region5: #{tpu_custom_call.1} parent=0 // loop_body
    %s13 = ssub.s32 %s8, 1
    %s14 = ssub.s32 %s8, 2
    %s15 = sadd.s32 %s8, 1
    %s16 = ssub.s32 %s8, %s15
    %p17 = scmp.eq.s32.totalorder %s16, 0
    %s19 = sadd.s32 %s18, 1
    %s20 = scalar_select %p17, %s18, %s19
    %p23 = pneg %p17
    %p24 = scmp.eq.s32.totalorder %s8, 1
    %p25 = por %p23, %p24
    %p26 = scmp.ne.s32.totalorder %s18, %s21
    %p27 = scmp.eq.s32.totalorder %s8, 0
    %p28 = por %p26, %p27
    %p29 = scmp.ne.s32.totalorder %s18, %s21
    %p30 = scmp.eq.s32.totalorder %s13, 1
    %p31 = por %p29, %p30
    %p32 = scmp.ne.s32.totalorder %s21, %s22
    %p33 = scmp.eq.s32.totalorder %s13, 0
    %p34 = por %p32, %p33
    %p35 = scmp.ne.s32.totalorder %s21, %s22
    %p36 = scmp.eq.s32.totalorder %s14, 1
    %p37 = por %p35, %p36
    %p39 = scmp.ne.s32.totalorder %s22, %s38
    %p40 = scmp.eq.s32.totalorder %s14, 0
    %p41 = por %p39, %p40
    %s42 = ssub.s32 %s8, %s15
    %p43 = scmp.eq.s32.totalorder %s42, 0
    %s45 = sadd.s32 %s44, 1
    %s46 = scalar_select %p43, %s44, %s45
    %p49 = pneg %p43
    %p50 = scmp.eq.s32.totalorder %s8, 1
    %p51 = por %p49, %p50
    %p52 = scmp.ne.s32.totalorder %s44, %s47
    %p53 = scmp.eq.s32.totalorder %s8, 0
    %p54 = por %p52, %p53
    %p55 = scmp.ne.s32.totalorder %s44, %s47
    %p56 = scmp.eq.s32.totalorder %s13, 1
    %p57 = por %p55, %p56
    %p58 = scmp.ne.s32.totalorder %s47, %s48
    %p59 = scmp.eq.s32.totalorder %s13, 0
    %p60 = por %p58, %p59
    %p61 = scmp.ne.s32.totalorder %s47, %s48
    %p62 = scmp.eq.s32.totalorder %s14, 1
    %p63 = por %p61, %p62
    %p65 = scmp.ne.s32.totalorder %s48, %s64
    %p66 = scmp.eq.s32.totalorder %s14, 0
    %p67 = por %p65, %p66
    %s68 = ssub.s32 %s8, %s15
    %p69 = scmp.eq.s32.totalorder %s68, 0
    %s71 = sadd.s32 %s70, 1
    %s72 = scalar_select %p69, %s70, %s71
    %p75 = pneg %p69
    %p76 = scmp.eq.s32.totalorder %s8, 1
    %p77 = por %p75, %p76
    %p78 = scmp.ne.s32.totalorder %s70, %s73
    %p79 = scmp.eq.s32.totalorder %s8, 0
    %p80 = por %p78, %p79
    %p81 = scmp.ne.s32.totalorder %s70, %s73
    %p82 = scmp.eq.s32.totalorder %s13, 1
    %p83 = por %p81, %p82
    %p84 = scmp.ne.s32.totalorder %s73, %s74
    %p85 = scmp.eq.s32.totalorder %s13, 0
    %p86 = por %p84, %p85
    %p87 = scmp.ne.s32.totalorder %s73, %s74
    %p88 = scmp.eq.s32.totalorder %s14, 1
    %p89 = por %p87, %p88
    %p91 = scmp.ne.s32.totalorder %s74, %s90
    %p92 = scmp.eq.s32.totalorder %s14, 0
    %p93 = por %p91, %p92
    %p94 = scmp.le.s32.totalorder 1, %s8
    %p95 = scmp.lt.s32.totalorder %s8, 3
    %p96 = pnand %p94, %p95
    %p97 = pneg %p96
    // Predicated region
    $region9: #{tpu_custom_call.1} parent=5 // pred_check
      _
    $region10: #{tpu_custom_call.1} parent=5 // pred_check_branch
      %99 = sbr.rel (%p96) target = $region12
    $region11: #{tpu_custom_call.1} parent=5 // pred_region
      %s100 = ssub.s32 %s8, 1
    $region12: #{tpu_custom_call.1} parent=5 // pred_fallthru
      _
    %p101 = scmp.lt.s32.totalorder %s8, 2
    // Predicated region
    $region13: #{tpu_custom_call.1} parent=5 // pred_check
      %p102 = pneg %p101
    $region14: #{tpu_custom_call.1} parent=5 // pred_check_branch
      %104 = sbr.rel (%p102) target = $region16
    $region15: #{tpu_custom_call.1} parent=5 // pred_region
      // Predicated region
      $region17: #{tpu_custom_call.1} parent=15 // pred_check
        %p105 = pneg %p28
      $region18: #{tpu_custom_call.1} parent=15 // pred_check_branch
        %107 = sbr.rel (%p105) target = $region20
      $region19: #{tpu_custom_call.1} parent=15 // pred_region
        %p108 = scmp.lt.s32.totalorder %s8, 1
        %s109 = scalar_select %p108, %s8, 1
        %s110 = smul.addr %s109, 8
        %s111 = scalar_lea.vmem %s0, %s110
      $region20: #{tpu_custom_call.1} parent=15 // pred_fallthru
        _
      // Predicated region
      $region21: #{tpu_custom_call.1} parent=15 // pred_check
        %p112 = pneg %p54
      $region22: #{tpu_custom_call.1} parent=15 // pred_check_branch
        %114 = sbr.rel (%p112) target = $region24
      $region23: #{tpu_custom_call.1} parent=15 // pred_region
        %p115 = scmp.lt.s32.totalorder %s8, 1
        %s116 = scalar_select %p115, %s8, 1
        %s117 = smul.addr %s116, 8
        %s118 = scalar_lea.vmem %s1, %s117
      $region24: #{tpu_custom_call.1} parent=15 // pred_fallthru
        _
    $region16: #{tpu_custom_call.1} parent=5 // pred_fallthru
      _
    %p119 = scmp.le.s32.totalorder 1, %s8
    %p120 = scmp.lt.s32.totalorder %s8, 3
    %p121 = pnand %p119, %p120
    %p122 = pneg %p121
    // Predicated region
    $region25: #{tpu_custom_call.1} parent=5 // pred_check
      _
    $region26: #{tpu_custom_call.1} parent=5 // pred_check_branch
      %124 = sbr.rel (%p121) target = $region28
    $region27: #{tpu_custom_call.1} parent=5 // pred_region
      %s125 = ssub.s32 %s8, 1
      %p126 = scmp.lt.s32.totalorder %s13, 1
      %s127 = scalar_select %p126, %s13, 1
      %s128 = smul.addr %s127, 8
      %s129 = scalar_lea.vmem %s0, %s128
      %p130 = pneg %p34
      %p131 = pneg %p31
      %p132 = scmp.lt.s32.totalorder %s13, 1
      %s133 = scalar_select %p132, %s13, 1
      %s134 = smul.addr %s133, 8
      %s135 = scalar_lea.vmem %s1, %s134
      %p136 = pneg %p60
      %p137 = pneg %p57
      %p138 = pneg %p86
      %p139 = pneg %p83
      %p140 = scmp.lt.s32.totalorder %s13, 1
      %s141 = scalar_select %p140, %s13, 1
      %s142 = smul.addr %s141, 8
      %s143 = scalar_lea.vmem %s2, %s142
      %p144 = scmp.lt.s32.totalorder %s13, 1
      %s145 = scalar_select %p144, %s13, 1
      %s146 = smul.addr %s145, 8
      %s147 = scalar_lea.vmem %s0, %s146
      %p148 = scmp.lt.s32.totalorder %s13, 1
      %s149 = scalar_select %p148, %s13, 1
      %s150 = smul.addr %s149, 8
      %s151 = scalar_lea.vmem %s1, %s150
      %p152 = scmp.lt.s32.totalorder %s13, 1
      %s153 = scalar_select %p152, %s13, 1
      %s154 = smul.addr %s153, 8
      %s155 = scalar_lea.vmem %s2, %s154
      %v156 = vld [vmem:[%s147] sm:$0xff]
      %v157 = vld [vmem:[%s151] sm:$0xff]
      %vm158 = vcmask 261120
      %v159 = vsel %vm158, %v156, -inf
      %160 = vmax.xlane.f32.xlu0 %v159
      %v161 = vpop.xlane.xlu0 %160
      %v162 = vsub.f32 %v156, %v161
      %v163 = vmul.f32 %v162, 1.442695
      %v164 = vpow.pop %v163
      %v165 = vsel %vm158, %v164, 0.0
      %166 = vadd.xlane.f32.xlu0 %v165
      %v167 = vpop.xlane.xlu0 %166
      %v168 = vlog2.pop %v167
      %v169 = vmul.f32 %v168, 0.6931472
      %v170 = vlaneseq
      %v171 = vand.u32 %v170, 127
      %172 = vset.pattern.permute.xlu0 0
      %173 = vperm.xlu0 %172, %v157
      %v174 = vpop.permute.xlu0 %173
      %vm175 = vcmp.eq.s32.totalorder %v171, %v174
      %v176 = vsel %vm175, %v162, 0.0
      %v177 = vsel %vm158, %v176, 0.0
      %178 = vadd.xlane.f32.xlu0 %v177
      %v179 = vpop.xlane.xlu0 %178
      %v180 = vsub.f32 %v179, %v169
      %v181 = vmul.f32 %v180, 1.442695
      %v182 = vpow.pop %v181
      %v183 = vsub.f32 1.0, %v182
      %v184 = vsub.f32 0.0, %v183
      %v185 = vmul.f32 %v184, %v180
      %vm186 = vcmask 7168
      %187 = vst.msk [vmem:[%s155] sm:$0xff] %vm186, %v185
      %p188 = scmp.lt.s32.totalorder %s13, 1
      %s189 = scalar_select %p188, %s13, 1
      %s190 = smul.addr %s189, 8
      %s191 = scalar_lea.vmem %s2, %s190
      // Predicated region
      $region29: #{tpu_custom_call.1} parent=27 // pred_check
        %p192 = pneg %p83
      $region30: #{tpu_custom_call.1} parent=27 // pred_check_branch
        %194 = sbr.rel (%p192) target = $region32
      $region31: #{tpu_custom_call.1} parent=27 // pred_region
        _
      $region32: #{tpu_custom_call.1} parent=27 // pred_fallthru
        _
    $region28: #{tpu_custom_call.1} parent=5 // pred_fallthru
      _
    %p195 = scmp.le.s32.totalorder 2, %s8
    // Predicated region
    $region33: #{tpu_custom_call.1} parent=5 // pred_check
      %p196 = pneg %p195
    $region34: #{tpu_custom_call.1} parent=5 // pred_check_branch
      %198 = sbr.rel (%p196) target = $region36
    $region35: #{tpu_custom_call.1} parent=5 // pred_region
      %s199 = ssub.s32 %s8, 2
      // Predicated region
      $region37: #{tpu_custom_call.1} parent=35 // pred_check
        %p200 = pneg %p89
      $region38: #{tpu_custom_call.1} parent=35 // pred_check_branch
        %202 = sbr.rel (%p200) target = $region40
      $region39: #{tpu_custom_call.1} parent=35 // pred_region
        %p203 = scmp.lt.s32.totalorder %s14, 1
        %s204 = scalar_select %p203, %s14, 1
        %s205 = smul.addr %s204, 8
        %s206 = scalar_lea.vmem %s2, %s205
      $region40: #{tpu_custom_call.1} parent=35 // pred_fallthru
        _
    $region36: #{tpu_custom_call.1} parent=5 // pred_fallthru
      _
  $region6: #{tpu_custom_call.1} parent=0 // loop_footer
    %s12 = sadd.s32 1, %s8
  $region7: #{tpu_custom_call.1} parent=0 // loop_footer_branch
    %7 = sbr.rel target = $region3
  $region8: #{tpu_custom_call.1} parent=0 // loop_exit
    _

</llo_original>
